<compile_context>
chip_gen: v6e
topology: v6e:2x2x1
jax: 0.10.0
libtpu: 0.0.40
codegen_flags: <defaults>
</compile_context>

<pallas_src>
import jax
import jax.numpy as jnp
from jax import lax
from jax.experimental import pallas as pl
from jax.experimental.pallas import tpu as pltpu

EPS = 1e-5  # nn.BatchNorm2d default eps


def _round_up(x, m):
    return ((x + m - 1) // m) * m


def _vmem_capacity_bytes():
    try:
        return int(pltpu.get_tpu_info().vmem_capacity_bytes)
    except Exception:
        return 64 << 20  # assume the smallest (v7x) part if the query is unavailable


# ---------------- fast path: a full (N, Tc, H*W) channel slab fits in VMEM ----------------

def _cbn_kernel(x_ref, gain_ref, bias_ref, o_ref):
    # x_ref   : (N, Tc, L)  activation tile (L = H*W, lane-dense)
    # gain_ref: (Tc, N)     y @ W_gain.T, channel-major so the VMEM block is lane-dense
    # bias_ref: (Tc, N)
    n, tc, l = x_ref.shape
    inv_cnt = 1.0 / float(n * l)

    # One-pass per-channel batch statistics over (N, H*W) == axes (0, 2), fp32 accumulate.
    # x_ref is re-read per use so no full-block fp32 copy stays live across the sweeps.
    mean = jnp.sum(x_ref[...].astype(jnp.float32), axis=(0, 2), keepdims=True) * inv_cnt
    ex2 = jnp.sum(jnp.square(x_ref[...].astype(jnp.float32)), axis=(0, 2),
                  keepdims=True) * inv_cnt
    var = jnp.maximum(ex2 - jnp.square(mean), 0.0)          # biased variance
    inv = lax.rsqrt(var + EPS)                               # (1, Tc, 1)

    # Fused affine: out = x * scale + shift  (single FMA sweep over the block).
    scale_cn = (1.0 + gain_ref[...].astype(jnp.float32)) * inv[0]      # (Tc, N)
    shift_cn = bias_ref[...].astype(jnp.float32) - mean[0] * scale_cn  # (Tc, N)
    scale = jnp.transpose(scale_cn)[:, :, None]              # (N, Tc, 1) — tiny XLU transpose
    shift = jnp.transpose(shift_cn)[:, :, None]

    o_ref[...] = (x_ref[...].astype(jnp.float32) * scale + shift).astype(o_ref.dtype)


# ---------------- fallback: two sweeps for activations too large for one slab -------------

def _stats_kernel(x_ref, stat_ref):
    # Accumulate per-channel [sum, sum_sq] of a (N, Tc, Tl) tile into a (Tc, 2) block.
    @pl.when(pl.program_id(1) == 0)
    def _():
        stat_ref[...] = jnp.zeros_like(stat_ref)

    s = jnp.sum(x_ref[...].astype(jnp.float32), axis=(0, 2), keepdims=True)   # (1, Tc, 1)
    sq = jnp.sum(jnp.square(x_ref[...].astype(jnp.float32)), axis=(0, 2), keepdims=True)
    stat_ref[:, 0:1] += s[0]
    stat_ref[:, 1:2] += sq[0]


def _apply_kernel(x_ref, scale_ref, shift_ref, o_ref):
    # x_ref: (N, Tc, Tl); scale_ref/shift_ref: (Tc, N) precomputed in the wrapper.
    scale = jnp.transpose(scale_ref[...])[:, :, None]         # (N, Tc, 1)
    shift = jnp.transpose(shift_ref[...])[:, :, None]
    o_ref[...] = (x_ref[...].astype(jnp.float32) * scale + shift).astype(o_ref.dtype)


# ---------------- tiling helpers -----------------------------------------------------------

def _channel_tile_candidates(c):
    # Tc must divide C and satisfy the sublane rule: Tc % 8 == 0 or Tc == C.
    return [tc for tc in range(1, c + 1) if c % tc == 0 and (tc == c or tc % 8 == 0)]


def _block_bytes(n, tc, l, itemsize):
    # Real VMEM footprint of a (N, Tc, L) block: sublane dim pads to 8, lane dim to 128.
    return n * _round_up(tc, 8) * _round_up(l, 128) * itemsize


def _pick_channel_tile(n, c, l, itemsize, target_block_bytes, min_tiles=2):
    cands = _channel_tile_candidates(c)
    fitting = [tc for tc in cands if _block_bytes(n, tc, l, itemsize) <= target_block_bytes]
    if not fitting:
        return None  # activation slab too big for one sweep -> two-sweep fallback
    # Prefer >=2 (even) grid steps so v7x can shard over its 2 TensorCores and the pipeline
    # can overlap compute with DMA; among those take the largest tile that fits.
    even = [tc for tc in fitting if (c // tc) >= min_tiles and (c // tc) % min_tiles == 0]
    multi = [tc for tc in fitting if (c // tc) >= min_tiles]
    for pool in (even, multi, fitting):
        if pool:
            return max(pool)


def _pick_spatial_tile(n, tc, l, itemsize, target_block_bytes):
    # Tl must divide L and satisfy the lane rule: Tl % 128 == 0 or Tl == L.
    cands = [tl for tl in range(1, l + 1) if l % tl == 0 and (tl == l or tl % 128 == 0)]
    fitting = [tl for tl in cands if _block_bytes(n, tc, tl, itemsize) <= target_block_bytes]
    if fitting:
        return max(fitting)
    # TODO(synk): if even the smallest lane-aligned spatial tile overflows, also split N.
    return min(cands)


# ---------------- public wrapper ------------------------------------------------------------

def conditional_batch_norm(x_nchw, y, w_gain, w_bias, *,
                           target_block_bytes=None, vmem_limit_bytes=None):
    """x_nchw: (N, C, H, W); y: (N, dim_in); w_*: (C, dim_in). Returns (N, C, H, W)."""
    N, C, H, W = x_nchw.shape
    L = H * W
    itemsize = jnp.dtype(x_nchw.dtype).itemsize

    # Generation-aware budgets (v7x: 64 MiB/TC -> ~32 MiB scoped / ~4 MiB blocks;
    # v5e/v6e: 128 MiB -> ~64 MiB scoped / ~8 MiB blocks).
    vmem_cap = _vmem_capacity_bytes()
    if vmem_limit_bytes is None:
        vmem_limit_bytes = min(vmem_cap // 2, 64 << 20)
    if target_block_bytes is None:
        target_block_bytes = max(vmem_limit_bytes // 8, 1 << 20)

    # Free reshape (no HBM transpose); channels in sublanes, spatial in lanes.
    x_ncl = x_nchw.reshape(N, C, L)

    # Tiny conditioning matmuls hoisted to XLA, produced channel-major (C, N) so the
    # kernel blocks are (Tc, N): lane-dense, no 128x lane padding of a size-1 dim.
    gain_cn = jnp.dot(w_gain, y.T, preferred_element_type=jnp.float32)   # (C, N)
    bias_cn = jnp.dot(w_bias, y.T, preferred_element_type=jnp.float32)   # (C, N)

    flops = 6 * N * C * L
    io_bytes = 2 * N * C * L * itemsize

    tc = _pick_channel_tile(N, C, L, itemsize, target_block_bytes)

    if tc is not None:
        # Fast path: each grid step owns the full (N, H*W) extent of Tc channels.
        out_ncl = pl.pallas_call(
            _cbn_kernel,
            out_shape=jax.ShapeDtypeStruct((N, C, L), x_nchw.dtype),
            grid=(C // tc,),
            in_specs=[
                pl.BlockSpec((N, tc, L), lambda c: (0, c, 0)),
                pl.BlockSpec((tc, N), lambda c: (c, 0)),
                pl.BlockSpec((tc, N), lambda c: (c, 0)),
            ],
            out_specs=pl.BlockSpec((N, tc, L), lambda c: (0, c, 0)),
            compiler_params=pltpu.CompilerParams(
                dimension_semantics=("parallel",),
                vmem_limit_bytes=vmem_limit_bytes,
            ),
            cost_estimate=pl.CostEstimate(flops=flops, transcendentals=C,
                                          bytes_accessed=io_bytes),
        )(x_ncl, gain_cn, bias_cn)
        return out_ncl.reshape(N, C, H, W)

    # Fallback (large activations): sweep 1 accumulates per-channel sum / sum-of-squares
    # over a (channel, spatial) grid; sweep 2 applies the fused scale/shift.
    tc = min(_channel_tile_candidates(C))
    tl = _pick_spatial_tile(N, tc, L, itemsize, target_block_bytes)

    stats = pl.pallas_call(
        _stats_kernel,
        out_shape=jax.ShapeDtypeStruct((C, 2), jnp.float32),
        grid=(C // tc, L // tl),
        in_specs=[pl.BlockSpec((N, tc, tl), lambda c, l: (0, c, l))],
        out_specs=pl.BlockSpec((tc, 2), lambda c, l: (c, 0)),
        compiler_params=pltpu.CompilerParams(
            dimension_semantics=("parallel", "arbitrary"),
            vmem_limit_bytes=vmem_limit_bytes,
        ),
        cost_estimate=pl.CostEstimate(flops=3 * N * C * L, transcendentals=0,
                                      bytes_accessed=N * C * L * itemsize),
    )(x_ncl)

    cnt = float(N * L)
    mean = stats[:, 0] / cnt                                    # (C,)
    var = jnp.maximum(stats[:, 1] / cnt - mean * mean, 0.0)     # biased variance
    inv = lax.rsqrt(var + EPS)
    scale_cn = (1.0 + gain_cn) * inv[:, None]                   # (C, N)
    shift_cn = bias_cn - mean[:, None] * scale_cn                # (C, N)

    out_ncl = pl.pallas_call(
        _apply_kernel,
        out_shape=jax.ShapeDtypeStruct((N, C, L), x_nchw.dtype),
        grid=(C // tc, L // tl),
        in_specs=[
            pl.BlockSpec((N, tc, tl), lambda c, l: (0, c, l)),
            pl.BlockSpec((tc, N), lambda c, l: (c, 0)),
            pl.BlockSpec((tc, N), lambda c, l: (c, 0)),
        ],
        out_specs=pl.BlockSpec((N, tc, tl), lambda c, l: (0, c, l)),
        compiler_params=pltpu.CompilerParams(
            dimension_semantics=("parallel", "parallel"),
            vmem_limit_bytes=vmem_limit_bytes,
        ),
        cost_estimate=pl.CostEstimate(flops=2 * N * C * L, transcendentals=0,
                                      bytes_accessed=io_bytes),
    )(x_ncl, scale_cn, shift_cn)
    return out_ncl.reshape(N, C, H, W)


def _reference(x, y, w_gain, w_bias):
    mean = x.mean(axis=(0, 2, 3), keepdims=True)
    var = ((x - mean) ** 2).mean(axis=(0, 2, 3), keepdims=True)
    xhat = (x - mean) / jnp.sqrt(var + EPS)
    gain = (y @ w_gain.T + 1.0)[:, :, None, None]
    bias = (y @ w_bias.T)[:, :, None, None]
    return bias + gain * xhat


if __name__ == "__main__":
    key = jax.random.PRNGKey(0)
    k1, k2, k3, k4, k5, k6, k7, k8 = jax.random.split(key, 8)

    # --- Test 1: fast path (batch=2, channels=4, spatial=16x16, dim_in=8) ---
    N, C, H, W, DIM_IN = 2, 4, 16, 16, 8
    bound = 1.0 / (DIM_IN ** 0.5)
    x = jax.random.normal(k1, (N, C, H, W), dtype=jnp.float32)
    y = jax.random.normal(k2, (N, DIM_IN), dtype=jnp.float32)
    # Deterministic Linear(dim_in -> num_features, bias=False) weights, torch layout (out, in).
    w_gain = jax.random.uniform(k3, (C, DIM_IN), minval=-bound, maxval=bound, dtype=jnp.float32)
    w_bias = jax.random.uniform(k4, (C, DIM_IN), minval=-bound, maxval=bound, dtype=jnp.float32)

    out = conditional_batch_norm(x, y, w_gain, w_bias)
    jax.block_until_ready(out)
    ref = _reference(x, y, w_gain, w_bias)
    assert out.shape == (N, C, H, W)
    assert jnp.allclose(out, ref, atol=1e-4, rtol=1e-4), "fast path mismatch vs reference"

    # --- Test 2: forced two-sweep fallback (large-activation path, tiny block budget) ---
    N2, C2, H2, W2 = 2, 16, 16, 16
    x2 = jax.random.normal(k5, (N2, C2, H2, W2), dtype=jnp.float32)
    y2 = jax.random.normal(k6, (N2, DIM_IN), dtype=jnp.float32)
    w_gain2 = jax.random.uniform(k7, (C2, DIM_IN), minval=-bound, maxval=bound, dtype=jnp.float32)
    w_bias2 = jax.random.uniform(k8, (C2, DIM_IN), minval=-bound, maxval=bound, dtype=jnp.float32)

    out2 = conditional_batch_norm(x2, y2, w_gain2, w_bias2, target_block_bytes=8 * 1024)
    jax.block_until_ready(out2)
    ref2 = _reference(x2, y2, w_gain2, w_bias2)
    assert out2.shape == (N2, C2, H2, W2)
    assert jnp.allclose(out2, ref2, atol=1e-4, rtol=1e-4), "fallback path mismatch vs reference"

    # TODO(synk): spectral_norm=True path (power iteration on the Linear weights) and
    # running_mean/var buffer updates (eval-mode BN) intentionally not implemented.
    print("KERNEL_OK")
</pallas_src>

<mosaic_0001>
module attributes {stable_mosaic.version = 11 : i64} {
  func.func @_cbn_kernel(%arg0: i32, %arg1: memref<2x4x256xf32, #tpu.memory_space<vmem>>, %arg2: memref<4x2xf32, #tpu.memory_space<vmem>>, %arg3: memref<4x2xf32, #tpu.memory_space<vmem>>, %arg4: memref<2x4x256xf32, #tpu.memory_space<vmem>>) attributes {dimension_semantics = [#tpu.dimension_semantics<parallel>], iteration_bounds = array<i64: 1>, scalar_prefetch = 0 : i64, scratch_operands = 0 : i64, tpu.core_type = #tpu.core_type<tc>, window_params = [{transform_indices = @transform_0, window_bounds = array<i64: 2, 4, 256>}, {transform_indices = @transform_1, window_bounds = array<i64: 4, 2>}, {transform_indices = @transform_2, window_bounds = array<i64: 4, 2>}, {transform_indices = @transform_3, window_bounds = array<i64: 2, 4, 256>}]} {
    %c0 = arith.constant 0 : index
    %c0_0 = arith.constant 0 : index
    %c0_1 = arith.constant 0 : index
    %0 = vector.load %arg1[%c0, %c0_0, %c0_1] : memref<2x4x256xf32, #tpu.memory_space<vmem>>, vector<2x4x256xf32>
    %cst = arith.constant dense<0.000000e+00> : vector<4xf32>
    %1 = vector.multi_reduction <add>, %0, %cst [0, 2] : vector<2x4x256xf32> to vector<4xf32>
    %2 = vector.shape_cast %1 : vector<4xf32> to vector<1x4x1xf32>
    %cst_2 = arith.constant 0.001953125 : f32
    %3 = vector.broadcast %cst_2 : f32 to vector<1x4x1xf32>
    %4 = arith.mulf %2, %3 : vector<1x4x1xf32>
    %c0_3 = arith.constant 0 : index
    %c0_4 = arith.constant 0 : index
    %c0_5 = arith.constant 0 : index
    %5 = vector.load %arg1[%c0_3, %c0_4, %c0_5] : memref<2x4x256xf32, #tpu.memory_space<vmem>>, vector<2x4x256xf32>
    %6 = arith.mulf %5, %5 : vector<2x4x256xf32>
    %cst_6 = arith.constant dense<0.000000e+00> : vector<4xf32>
    %7 = vector.multi_reduction <add>, %6, %cst_6 [0, 2] : vector<2x4x256xf32> to vector<4xf32>
    %8 = vector.shape_cast %7 : vector<4xf32> to vector<1x4x1xf32>
    %cst_7 = arith.constant 0.001953125 : f32
    %9 = vector.broadcast %cst_7 : f32 to vector<1x4x1xf32>
    %10 = arith.mulf %8, %9 : vector<1x4x1xf32>
    %11 = arith.mulf %4, %4 : vector<1x4x1xf32>
    %12 = arith.subf %10, %11 : vector<1x4x1xf32>
    %cst_8 = arith.constant 0.000000e+00 : f32
    %13 = vector.broadcast %cst_8 : f32 to vector<1x4x1xf32>
    %14 = arith.maximumf %12, %13 : vector<1x4x1xf32>
    %cst_9 = arith.constant 9.99999974E-6 : f32
    %15 = vector.broadcast %cst_9 : f32 to vector<1x4x1xf32>
    %16 = arith.addf %14, %15 : vector<1x4x1xf32>
    %17 = math.rsqrt %16 : vector<1x4x1xf32>
    %c0_10 = arith.constant 0 : index
    %c0_11 = arith.constant 0 : index
    %18 = vector.load %arg2[%c0_10, %c0_11] : memref<4x2xf32, #tpu.memory_space<vmem>>, vector<4x2xf32>
    %cst_12 = arith.constant 1.000000e+00 : f32
    %19 = vector.broadcast %cst_12 : f32 to vector<4x2xf32>
    %20 = arith.addf %19, %18 : vector<4x2xf32>
    %21 = vector.shape_cast %17 : vector<1x4x1xf32> to vector<4x1xf32>
    %22 = vector.broadcast %21 : vector<4x1xf32> to vector<4x2xf32>
    %23 = arith.mulf %20, %22 : vector<4x2xf32>
    %c0_13 = arith.constant 0 : index
    %c0_14 = arith.constant 0 : index
    %24 = vector.load %arg3[%c0_13, %c0_14] : memref<4x2xf32, #tpu.memory_space<vmem>>, vector<4x2xf32>
    %25 = vector.shape_cast %4 : vector<1x4x1xf32> to vector<4x1xf32>
    %26 = vector.broadcast %25 : vector<4x1xf32> to vector<4x2xf32>
    %27 = arith.mulf %26, %23 : vector<4x2xf32>
    %28 = arith.subf %24, %27 : vector<4x2xf32>
    %29 = tpu.transpose %23, [1, 0] : vector<4x2xf32> -> vector<2x4xf32>
    %30 = vector.shape_cast %29 : vector<2x4xf32> to vector<2x4x1xf32>
    %31 = tpu.transpose %28, [1, 0] : vector<4x2xf32> -> vector<2x4xf32>
    %32 = vector.shape_cast %31 : vector<2x4xf32> to vector<2x4x1xf32>
    %c0_15 = arith.constant 0 : index
    %c0_16 = arith.constant 0 : index
    %c0_17 = arith.constant 0 : index
    %33 = vector.load %arg1[%c0_15, %c0_16, %c0_17] : memref<2x4x256xf32, #tpu.memory_space<vmem>>, vector<2x4x256xf32>
    %34 = vector.broadcast %30 : vector<2x4x1xf32> to vector<2x4x256xf32>
    %35 = arith.mulf %33, %34 : vector<2x4x256xf32>
    %36 = vector.broadcast %32 : vector<2x4x1xf32> to vector<2x4x256xf32>
    %37 = arith.addf %35, %36 : vector<2x4x256xf32>
    %c0_18 = arith.constant 0 : index
    %c0_19 = arith.constant 0 : index
    %c0_20 = arith.constant 0 : index
    %38 = vector.load %arg4[%c0_18, %c0_19, %c0_20] : memref<2x4x256xf32, #tpu.memory_space<vmem>>, vector<2x4x256xf32>
    tpu.vector_store %arg4[%c0_18, %c0_19, %c0_20], %37 {strides = array<i32>} : memref<2x4x256xf32, #tpu.memory_space<vmem>>, vector<2x4x256xf32>,
    return
  }
  func.func @transform_0(%arg0: i32) -> (i32, i32, i32) {
    %c0_i32 = arith.constant 0 : i32
    %c0_i32_0 = arith.constant 0 : i32
    %c0_i32_1 = arith.constant 0 : i32
    return %c0_i32, %arg0, %c0_i32_0 : i32, i32, i32
  }
  func.func @transform_1(%arg0: i32) -> (i32, i32) {
    %c0_i32 = arith.constant 0 : i32
    %c0_i32_0 = arith.constant 0 : i32
    return %arg0, %c0_i32 : i32, i32
  }
  func.func @transform_2(%arg0: i32) -> (i32, i32) {
    %c0_i32 = arith.constant 0 : i32
    %c0_i32_0 = arith.constant 0 : i32
    return %arg0, %c0_i32 : i32, i32
  }
  func.func @transform_3(%arg0: i32) -> (i32, i32, i32) {
    %c0_i32 = arith.constant 0 : i32
    %c0_i32_0 = arith.constant 0 : i32
    %c0_i32_1 = arith.constant 0 : i32
    return %c0_i32, %arg0, %c0_i32_0 : i32, i32, i32
  }
}

</mosaic_0001>

<llo_original>
// kernel: tpu_custom_call.1
$region0: #{tpu_custom_call.1}
  #allocation0 [shape = 'u32[]', space=smem, size = 0x4, offset = 0x4, fixed_abs, tag = 'smem constant byte address 0x4 - core index']
  #allocation1 [shape = 'u32[144,128]{1,0:T(1,128)}', space=vmem, size = 0x12000, scoped, tag = 'internal scratch']
  %s0 = inlined_call_operand.hbm [shape: f32[2,4,256], index: 0, kind: input, shape index: {}]
  %s1 = inlined_call_operand.vmem [shape: f32[4,2], index: 1, kind: input, shape index: {}]
  %s2 = inlined_call_operand.vmem [shape: f32[4,2], index: 2, kind: input, shape index: {}]
  %s3 = inlined_call_operand.hbm [shape: f32[2,4,256], index: 3, kind: output, shape index: {}]
  %s4 = sld [smem:[#allocation0]]
  $region26: #{tpu_custom_call.1} parent=0
    _
  %s6 = ssub.s32 1, %s4
  %s7 = scalar_select 0, %s6, %s4
  $region1: #{tpu_custom_call.1} parent=0
    #allocation2 [shape = 'u8[8192]{0}', space=vmem, size = 0x2000, scoped, tag = 'input window, operand 0, single buffered']
    #allocation3 [shape = 's32[1]{0}', space=sflag, size = 0x4, scoped, tag = 'scoped memory for tpu_custom_call.1']
    #allocation4 [shape = 's32[1]{0}', space=sflag, size = 0x4, scoped, tag = 'scoped memory for tpu_custom_call.1']
    #allocation5 [shape = 'u8[8192]{0}', space=vmem, size = 0x2000, scoped, tag = 'output window, operand 0, single buffered']
    %8 = vsyncpa [#allocation3], 0
    %9 = vsyncpa [#allocation4], 0
    // Predicated region
    $region2: #{tpu_custom_call.1} parent=1 // pred_check
      _
    $region3: #{tpu_custom_call.1} parent=1 // pred_check_branch
      %11 = sbr.rel (0) target = $region5
    $region4: #{tpu_custom_call.1} parent=1 // pred_region
      %s13 = ssub.s32 256, 256
      %14 = vsyncadd [#allocation3], %s13
      %s15 = sshll.u32 [#allocation2], 4
      %s16 = int_to_ptr.vmem [resolvable:$true] %s15
      %21 = dma.hbm_to_vmem [thread:$0]  %s0, 256, %s16, [#allocation3], 128, 128, 8
    $region5: #{tpu_custom_call.1} parent=1 // pred_fallthru
      _
    // Predicated region
    $region6: #{tpu_custom_call.1} parent=1 // pred_check
      _
    $region7: #{tpu_custom_call.1} parent=1 // pred_check_branch
      %23 = sbr.rel (0) target = $region9
    $region8: #{tpu_custom_call.1} parent=1 // pred_region
      _
    $region9: #{tpu_custom_call.1} parent=1 // pred_fallthru
      _
    // Predicated region
    $region10: #{tpu_custom_call.1} parent=1 // pred_check
      _
    $region11: #{tpu_custom_call.1} parent=1 // pred_check_branch
      %25 = sbr.rel (0) target = $region13
    $region12: #{tpu_custom_call.1} parent=1 // pred_region
      _
    $region13: #{tpu_custom_call.1} parent=1 // pred_fallthru
      _
    // Predicated region
    $region14: #{tpu_custom_call.1} parent=1 // pred_check
      _
    $region15: #{tpu_custom_call.1} parent=1 // pred_check_branch
      %27 = sbr.rel (0) target = $region17
    $region16: #{tpu_custom_call.1} parent=1 // pred_region
      %28 = dma.done [#allocation3], 256
    $region17: #{tpu_custom_call.1} parent=1 // pred_fallthru
      _
    %v29 = vld [vmem:[#allocation2] sm:$0xff]
    %v30 = vld [vmem:[#allocation2 + $0x8] sm:$0xff]
    %v33 = vcombine.high %v29, %v29
    %v34 = vcombine.high %v30, %v30
    %vm37 = vcmask 1043456
    %v38 = vsel %vm37, %v29, 0.0
    %v39 = vsel %vm37, %v33, 0.0
    %v40 = vadd.f32 %v38, %v39
    %v41 = vsel %vm37, %v30, 0.0
    %v42 = vadd.f32 %v40, %v41
    %v43 = vsel %vm37, %v34, 0.0
    %v44 = vadd.f32 %v42, %v43
    %45 = vadd.xlane.f32.xlu0 %v44
    %v46 = vpop.xlane.xlu0 %45
    %v47 = vmul.f32 %v46, 0.001953125
    %v48 = vmul.f32 %v29, %v29
    %v49 = vmul.f32 %v30, %v30
    %v52 = vcombine.high %v48, %v48
    %v53 = vcombine.high %v49, %v49
    %v56 = vsel %vm37, %v48, 0.0
    %v57 = vsel %vm37, %v52, 0.0
    %v58 = vadd.f32 %v56, %v57
    %v59 = vsel %vm37, %v49, 0.0
    %v60 = vadd.f32 %v58, %v59
    %v61 = vsel %vm37, %v53, 0.0
    %v62 = vadd.f32 %v60, %v61
    %63 = vadd.xlane.f32.xlu0 %v62
    %v64 = vpop.xlane.xlu0 %63
    %v65 = vmul.f32 %v64, 0.001953125
    %v66 = vmul.f32 %v47, %v47
    %v67 = vsub.f32 %v65, %v66
    %v68 = vmax.f32 %v67, 0.0
    %v69 = vadd.f32 %v68, 1e-05
    %v70 = vrsqrt.pop %v69
    %v71 = vld [vmem:[%s1] sm:$0xf]
    %v72 = vadd.f32 %v71, 1.0
    %v73 = vmul.f32 %v72, %v70
    %v74 = vld [vmem:[%s2] sm:$0xf]
    %v75 = vmul.f32 %v47, %v73
    %v76 = vsub.f32 %v74, %v75
    %77 = vxpose.xlu0.b32.start [1/16] %v73, 128
    %78 = vxpose.xlu0.b32.cont [2/16] 0.0, 128
    %79 = vxpose.xlu0.b32.cont [3/16] 0.0, 128
    %80 = vxpose.xlu0.b32.cont [4/16] 0.0, 128
    %81 = vxpose.xlu0.b32.cont [5/16] 0.0, 128
    %82 = vxpose.xlu0.b32.cont [6/16] 0.0, 128
    %83 = vxpose.xlu0.b32.cont [7/16] 0.0, 128
    %84 = vxpose.xlu0.b32.cont [8/16] 0.0, 128
    %85 = vxpose.xlu0.b32.cont [9/16] 0.0, 128
    %86 = vxpose.xlu0.b32.cont [10/16] 0.0, 128
    %87 = vxpose.xlu0.b32.cont [11/16] 0.0, 128
    %88 = vxpose.xlu0.b32.cont [12/16] 0.0, 128
    %89 = vxpose.xlu0.b32.cont [13/16] 0.0, 128
    %90 = vxpose.xlu0.b32.cont [14/16] 0.0, 128
    %91 = vxpose.xlu0.b32.cont [15/16] 0.0, 128
    %92 = vxpose.xlu0.b32.end [16/16] 0.0, 128
    %v93 = vpop.trf.xlu0
    %v94 = vpop.trf.xlu0
    %v95 = vpop.trf.xlu0
    %v96 = vpop.trf.xlu0
    %v97 = vpop.trf.xlu0
    %v98 = vpop.trf.xlu0
    %v99 = vpop.trf.xlu0
    %v100 = vpop.trf.xlu0
    %v101 = vpop.trf.xlu0
    %v102 = vpop.trf.xlu0
    %v103 = vpop.trf.xlu0
    %v104 = vpop.trf.xlu0
    %v105 = vpop.trf.xlu0
    %v106 = vpop.trf.xlu0
    %v107 = vpop.trf.xlu0
    %v108 = vpop.trf.xlu0
    %v109 = vlaneseq
    %v110 = vshrl.u32 %v109, 7
    %v111 = vsub.s32 0, %v110
    %v112 = vrot.slane %v93, %v111
    %114 = vbcast.lane.b32.xlu0 %v112, 256
    %v115 = vpop.permute.xlu0 %114
    %v116 = vlaneseq
    %v117 = vshrl.u32 %v116, 7
    %v118 = vsub.s32 1, %v117
    %v119 = vrot.slane %v93, %v118
    %121 = vbcast.lane.b32.xlu0 %v119, 256
    %v122 = vpop.permute.xlu0 %121
    %123 = vxpose.xlu0.b32.start [1/16] %v76, 128
    %124 = vxpose.xlu0.b32.cont [2/16] 0.0, 128
    %125 = vxpose.xlu0.b32.cont [3/16] 0.0, 128
    %126 = vxpose.xlu0.b32.cont [4/16] 0.0, 128
    %127 = vxpose.xlu0.b32.cont [5/16] 0.0, 128
    %128 = vxpose.xlu0.b32.cont [6/16] 0.0, 128
    %129 = vxpose.xlu0.b32.cont [7/16] 0.0, 128
    %130 = vxpose.xlu0.b32.cont [8/16] 0.0, 128
    %131 = vxpose.xlu0.b32.cont [9/16] 0.0, 128
    %132 = vxpose.xlu0.b32.cont [10/16] 0.0, 128
    %133 = vxpose.xlu0.b32.cont [11/16] 0.0, 128
    %134 = vxpose.xlu0.b32.cont [12/16] 0.0, 128
    %135 = vxpose.xlu0.b32.cont [13/16] 0.0, 128
    %136 = vxpose.xlu0.b32.cont [14/16] 0.0, 128
    %137 = vxpose.xlu0.b32.cont [15/16] 0.0, 128
    %138 = vxpose.xlu0.b32.end [16/16] 0.0, 128
    %v139 = vpop.trf.xlu0
    %v140 = vpop.trf.xlu0
    %v141 = vpop.trf.xlu0
    %v142 = vpop.trf.xlu0
    %v143 = vpop.trf.xlu0
    %v144 = vpop.trf.xlu0
    %v145 = vpop.trf.xlu0
    %v146 = vpop.trf.xlu0
    %v147 = vpop.trf.xlu0
    %v148 = vpop.trf.xlu0
    %v149 = vpop.trf.xlu0
    %v150 = vpop.trf.xlu0
    %v151 = vpop.trf.xlu0
    %v152 = vpop.trf.xlu0
    %v153 = vpop.trf.xlu0
    %v154 = vpop.trf.xlu0
    %v155 = vlaneseq
    %v156 = vshrl.u32 %v155, 7
    %v157 = vsub.s32 0, %v156
    %v158 = vrot.slane %v139, %v157
    %160 = vbcast.lane.b32.xlu0 %v158, 256
    %v161 = vpop.permute.xlu0 %160
    %v162 = vlaneseq
    %v163 = vshrl.u32 %v162, 7
    %v164 = vsub.s32 1, %v163
    %v165 = vrot.slane %v139, %v164
    %167 = vbcast.lane.b32.xlu0 %v165, 256
    %v168 = vpop.permute.xlu0 %167
    %v172 = vunpack.c.l.s4 839922192
    %v173 = vunpack.c.0.s8 %v172
    %v174 = vlaneseq
    %v175 = vshrl.u32 %v174, 7
    %v176 = vsub.s32 %v173, %v175
    %v177 = vrot.slane %v115, %v176
    %v179 = vunpack.c.l.s4 839922192
    %v180 = vunpack.c.0.s8 %v179
    %v181 = vlaneseq
    %v182 = vshrl.u32 %v181, 7
    %v183 = vsub.s32 %v180, %v182
    %v184 = vrot.slane %v122, %v183
    %v187 = vmul.f32 %v29, %v177
    %v188 = vmul.f32 %v30, %v184
    %v192 = vunpack.c.l.s4 839922192
    %v193 = vunpack.c.0.s8 %v192
    %v194 = vlaneseq
    %v195 = vshrl.u32 %v194, 7
    %v196 = vsub.s32 %v193, %v195
    %v197 = vrot.slane %v161, %v196
    %v199 = vunpack.c.l.s4 839922192
    %v200 = vunpack.c.0.s8 %v199
    %v201 = vlaneseq
    %v202 = vshrl.u32 %v201, 7
    %v203 = vsub.s32 %v200, %v202
    %v204 = vrot.slane %v168, %v203
    %v207 = vadd.f32 %v187, %v197
    %v208 = vadd.f32 %v188, %v204
    %209 = vst [vmem:[#allocation5] sm:$0xff] %v207
    %210 = vst [vmem:[#allocation5 + $0x8] sm:$0xff] %v208
    // Predicated region
    $region18: #{tpu_custom_call.1} parent=1 // pred_check
      _
    $region19: #{tpu_custom_call.1} parent=1 // pred_check_branch
      %212 = sbr.rel (0) target = $region21
    $region20: #{tpu_custom_call.1} parent=1 // pred_region
      %s214 = ssub.s32 256, 256
      %215 = vsyncadd [#allocation4], %s214
      %s216 = sshll.u32 [#allocation5], 4
      %s217 = int_to_ptr.vmem [resolvable:$true] %s216
      %222 = dma.vmem_to_hbm [thread:$0]  %s217, 256, %s3, [#allocation4], 128, 128, 8
    $region21: #{tpu_custom_call.1} parent=1 // pred_fallthru
      _
    // Predicated region
    $region22: #{tpu_custom_call.1} parent=1 // pred_check
      _
    $region23: #{tpu_custom_call.1} parent=1 // pred_check_branch
      %224 = sbr.rel (0) target = $region25
    $region24: #{tpu_custom_call.1} parent=1 // pred_region
      %225 = dma.done [#allocation4], 256
    $region25: #{tpu_custom_call.1} parent=1 // pred_fallthru
      _
    %226 = vsyncpa [#allocation3], 1
    %227 = vsyncpa [#allocation4], 1

</llo_original>
